<compile_context>
chip_gen: v5e
topology: v5e:2x2
jax: 0.10.0
libtpu: 0.0.40
codegen_flags: <defaults>
</compile_context>

<pallas_src>
import functools

import jax
import jax.numpy as jnp
import numpy as np
from jax import lax
from jax.experimental import pallas as pl
from jax.experimental.pallas import tpu as pltpu

_BIG = 1e30  # finite sentinel: -BIG - BIG stays finite, clamps to 0, never counts


def _sum2d(x):
    # (R, C) -> (1, 1) via two single-axis keepdims reductions (robust lowering).
    return jnp.sum(jnp.sum(x, axis=1, keepdims=True), axis=0, keepdims=True)


def _all_triplet_kernel(ids_pref_ref,                       # scalar prefetch: (Npad,) int32 (SMEM)
                        ids_col_ref, ids_row_ref, emb_ref,  # inputs: (Npad,1) i32, (1,Npad) i32, (Npad,D) f32
                        out_ref,                            # output: (8, 128) f32 partials for this anchor block
                        *, ta, tk, n_real, margin, use_bf16_dot):
    i = pl.program_id(0)
    n_pad, d = emb_ref.shape
    start = pl.multiple_of(i * ta, ta)

    E = emb_ref[...]                                   # (Npad, D) f32
    Eb = emb_ref[pl.ds(start, ta), :]                  # (TA, D) anchor block

    dn = (((1,), (1,)), ((), ()))                      # contract last dims (NT matmul)

    # squared norms (f32; computed once per step, shared by the TA anchors)
    S = E * E
    Sb = Eb * Eb
    sqn_col = jnp.sum(S, axis=1, keepdims=True)                                        # (Npad, 1)
    ones_row = jnp.ones((1, d), jnp.float32)
    sqn_row = lax.dot_general(ones_row, S, dn, preferred_element_type=jnp.float32)     # (1, Npad)
    sqn_b_col = jnp.sum(Sb, axis=1, keepdims=True)                                     # (TA, 1)
    sqn_b_row = lax.dot_general(ones_row, Sb, dn, preferred_element_type=jnp.float32)  # (1, TA)

    # block Gram matmuls (full-width MXU work; optionally bf16 inputs, f32 accumulate)
    if use_bf16_dot:
        E_d, Eb_d = E.astype(jnp.bfloat16), Eb.astype(jnp.bfloat16)
    else:
        E_d, Eb_d = E, Eb
    g_rows = lax.dot_general(Eb_d, E_d, dn, preferred_element_type=jnp.float32)        # (TA, Npad)
    g_cols = lax.dot_general(E_d, Eb_d, dn, preferred_element_type=jnp.float32)        # (Npad, TA)

    # clamped pairwise squared distances of each anchor in the block to every sample
    pd_rows = jnp.maximum(sqn_b_col + sqn_row - 2.0 * g_rows, 0.0)   # (TA, Npad): d(anchor, k)
    pd_cols = jnp.maximum(sqn_col + sqn_b_row - 2.0 * g_cols, 0.0)   # (Npad, TA): d(j, anchor)

    jcol = lax.broadcasted_iota(jnp.int32, (n_pad, 1), 0)            # (Npad, 1)
    krow = lax.broadcasted_iota(jnp.int32, (1, n_pad), 1)            # (1, Npad)
    ids_col = ids_col_ref[...]                                       # (Npad, 1) int32
    ids_row = ids_row_ref[...]                                       # (1, Npad) int32

    s_loss = jnp.zeros((1, 1), jnp.float32)
    s_pos = jnp.zeros((1, 1), jnp.float32)
    s_val = jnp.zeros((1, 1), jnp.float32)

    padded = (n_pad != n_real)

    for t in range(ta):                        # TA anchors per grid step (static unroll)
        g = start + t                          # global anchor index (traced scalar)
        id_a = ids_pref_ref[g]                 # this anchor's label (scalar, SMEM)

        c = (jcol != g) & (ids_col == id_a)    # valid-positive column mask (Npad, 1)
        r = (krow != g) & (ids_row != id_a)    # valid-negative row mask    (1, Npad)
        if padded:
            c = c & (jcol < n_real) & (g < n_real)
            r = r & (krow < n_real)

        # #valid triplets for this anchor = |c| * |r| (j == k is impossible when c & r)
        s_val = s_val + (jnp.sum(c.astype(jnp.float32), axis=0, keepdims=True)
                         * jnp.sum(r.astype(jnp.float32), axis=1, keepdims=True))

        # margin folded into the positive column; mask applied via +/-BIG sentinels
        pos_m = jnp.where(c, pd_cols[:, t:t + 1] + margin, -_BIG)    # (Npad, 1)
        neg_m = jnp.where(r, pd_rows[t:t + 1, :], _BIG)              # (1, Npad)

        # lane-aligned tiles over the negative (k) axis to bound vreg/VMEM pressure
        for k0 in range(0, n_pad, tk):
            k1 = min(k0 + tk, n_pad)
            lt = jnp.maximum(pos_m - neg_m[:, k0:k1], 0.0)           # (Npad, k1-k0)
            s_loss = s_loss + _sum2d(lt)
            s_pos = s_pos + _sum2d((lt > 1e-16).astype(jnp.float32))

    # lane-dense per-block partials: [loss_sum, n_pos, n_val, 0, ...] on sublane 0
    lane = lax.broadcasted_iota(jnp.int32, (8, 128), 1)
    sub = lax.broadcasted_iota(jnp.int32, (8, 128), 0)
    row0 = sub == 0
    out_ref[...] = (jnp.where(row0 & (lane == 0), s_loss, 0.0)
                    + jnp.where(row0 & (lane == 1), s_pos, 0.0)
                    + jnp.where(row0 & (lane == 2), s_val, 0.0))


@functools.partial(jax.jit,
                   static_argnames=("margin", "block_anchors", "block_k", "use_bf16_dot"))
def all_triplet_miner(ids, embeddings, margin=0.5, block_anchors=8, block_k=512,
                      use_bf16_dot=False):
    """JAX/Pallas equivalent of AllTripletMiner.forward -> (loss, f_pos_tri)."""
    n, d = embeddings.shape
    ta = int(block_anchors)
    n_pad = ((n + ta - 1) // ta) * ta

    emb = embeddings.astype(jnp.float32)
    ids = ids.astype(jnp.int32)
    if n_pad != n:
        emb = jnp.pad(emb, ((0, n_pad - n), (0, 0)))
        ids = jnp.pad(ids, (0, n_pad - n))     # padded rows are excluded by index checks
    ids_col = ids.reshape(n_pad, 1)
    ids_row = ids.reshape(1, n_pad)
    num_blocks = n_pad // ta

    kernel = functools.partial(_all_triplet_kernel, ta=ta, tk=int(block_k),
                               n_real=int(n), margin=float(margin),
                               use_bf16_dot=bool(use_bf16_dot))
    grid_spec = pltpu.PrefetchScalarGridSpec(
        num_scalar_prefetch=1,
        grid=(num_blocks,),
        in_specs=[
            pl.BlockSpec((n_pad, 1), lambda i, ids_ref: (0, 0)),
            pl.BlockSpec((1, n_pad), lambda i, ids_ref: (0, 0)),
            pl.BlockSpec((n_pad, d), lambda i, ids_ref: (0, 0)),
        ],
        out_specs=pl.BlockSpec((8, 128), lambda i, ids_ref: (i, 0)),
    )
    partials = pl.pallas_call(
        kernel,
        out_shape=jax.ShapeDtypeStruct((num_blocks * 8, 128), jnp.float32),
        grid_spec=grid_spec,
        compiler_params=pltpu.CompilerParams(dimension_semantics=("parallel",)),
    )(ids, ids_col, ids_row, emb)

    totals = jnp.sum(partials, axis=0)         # (128,): non-partial lanes/sublanes are 0
    loss_sum, n_pos, n_val = totals[0], totals[1], totals[2]
    loss = loss_sum / (n_pos + 1e-16)
    f_pos = n_pos / (n_val + 1e-16)
    return loss, f_pos


def ref_all_triplet_miner(ids, emb, margin=0.5):
    """Pure-JAX reference mirroring the PyTorch module exactly."""
    dot = jnp.matmul(emb, emb.T)
    sq = jnp.diag(dot)
    pd = sq[None, :] - 2.0 * dot + sq[:, None]
    pd = jnp.maximum(pd, 0.0)
    n = ids.shape[0]
    ne = ~jnp.eye(n, dtype=bool)
    distinct = ne[:, :, None] & ne[:, None, :] & ne[None, :, :]
    eq = ids[None, :] == ids[:, None]
    valid = eq[:, :, None] & ~eq[:, None, :]
    mask = (distinct & valid).astype(jnp.float32)
    loss = pd[:, :, None] - pd[:, None, :] + margin
    loss = jnp.maximum(loss * mask, 0.0)
    n_pos = jnp.sum((loss > 1e-16).astype(jnp.float32))
    n_val = jnp.sum(mask)
    return jnp.sum(loss) / (n_pos + 1e-16), n_pos / (n_val + 1e-16)


if __name__ == "__main__":
    key = jax.random.PRNGKey(0)
    k_emb, k_ids = jax.random.split(key)
    N, D = 8, 32
    embeddings = jax.random.normal(k_emb, (N, D), dtype=jnp.float32)
    ids = jax.random.randint(k_ids, (N,), 0, 3, dtype=jnp.int32)

    loss, fpos = all_triplet_miner(ids, embeddings)
    jax.block_until_ready((loss, fpos))

    ref_loss, ref_fpos = ref_all_triplet_miner(ids, embeddings)
    np.testing.assert_allclose(np.asarray(loss), np.asarray(ref_loss), rtol=5e-2, atol=5e-2)
    np.testing.assert_allclose(np.asarray(fpos), np.asarray(ref_fpos), rtol=5e-2, atol=5e-2)

    print("KERNEL_OK")
</pallas_src>

<mosaic_0001>
module attributes {stable_mosaic.version = 11 : i64} {
  func.func @_all_triplet_kernel(%arg0: i32, %arg1: memref<8xi32, #tpu.memory_space<smem>>, %arg2: memref<8x1xi32, #tpu.memory_space<vmem>>, %arg3: memref<1x8xi32, #tpu.memory_space<vmem>>, %arg4: memref<8x32xf32, #tpu.memory_space<vmem>>, %arg5: memref<8x128xf32, #tpu.memory_space<vmem>>) attributes {dimension_semantics = [#tpu.dimension_semantics<parallel>], iteration_bounds = array<i64: 1>, scalar_prefetch = 1 : i64, scratch_operands = 0 : i64, tpu.core_type = #tpu.core_type<tc>, window_params = [{pipeline_mode = #tpu.pipeline_mode<synchronous>, transform_indices = @transform_0, window_bounds = array<i64: 8, 1>}, {pipeline_mode = #tpu.pipeline_mode<synchronous>, transform_indices = @transform_1, window_bounds = array<i64: 1, 8>}, {pipeline_mode = #tpu.pipeline_mode<synchronous>, transform_indices = @transform_2, window_bounds = array<i64: 8, 32>}, {transform_indices = @transform_3, window_bounds = array<i64: 8, 128>}]} {
    %c8_i32 = arith.constant 8 : i32
    %0 = arith.muli %arg0, %c8_i32 : i32
    %1 = tpu.assume_multiple %0, 8 : i32
    %c0 = arith.constant 0 : index
    %c0_0 = arith.constant 0 : index
    %2 = vector.load %arg4[%c0, %c0_0] : memref<8x32xf32, #tpu.memory_space<vmem>>, vector<8x32xf32>
    %3 = arith.index_cast %1 : i32 to index
    %c0_1 = arith.constant 0 : index
    %4 = vector.load %arg4[%3, %c0_1] : memref<8x32xf32, #tpu.memory_space<vmem>>, vector<8x32xf32>
    %5 = arith.mulf %2, %2 : vector<8x32xf32>
    %6 = arith.mulf %4, %4 : vector<8x32xf32>
    %cst = arith.constant dense<0.000000e+00> : vector<8xf32>
    %7 = vector.multi_reduction <add>, %5, %cst [1] : vector<8x32xf32> to vector<8xf32>
    %8 = vector.shape_cast %7 : vector<8xf32> to vector<8x1xf32>
    %cst_2 = arith.constant 1.000000e+00 : f32
    %9 = vector.broadcast %cst_2 : f32 to vector<1x32xf32>
    %cst_3 = arith.constant dense<0.000000e+00> : vector<1x8xf32>
    %10 = tpu.matmul %9, %5, %cst_3 {dimension_numbers = #tpu.dot_dimension_numbers<[1], [1], [0], [0], [0, 0, 1, 0], [], []>} : vector<1x32xf32>, vector<8x32xf32>, vector<1x8xf32> -> vector<1x8xf32>
    %cst_4 = arith.constant dense<0.000000e+00> : vector<8xf32>
    %11 = vector.multi_reduction <add>, %6, %cst_4 [1] : vector<8x32xf32> to vector<8xf32>
    %12 = vector.shape_cast %11 : vector<8xf32> to vector<8x1xf32>
    %cst_5 = arith.constant dense<0.000000e+00> : vector<1x8xf32>
    %13 = tpu.matmul %9, %6, %cst_5 {dimension_numbers = #tpu.dot_dimension_numbers<[1], [1], [0], [0], [0, 0, 1, 0], [], []>} : vector<1x32xf32>, vector<8x32xf32>, vector<1x8xf32> -> vector<1x8xf32>
    %cst_6 = arith.constant dense<0.000000e+00> : vector<8x8xf32>
    %14 = tpu.matmul %4, %2, %cst_6 {dimension_numbers = #tpu.dot_dimension_numbers<[1], [1], [0], [0], [0, 0, 1, 0], [], []>} : vector<8x32xf32>, vector<8x32xf32>, vector<8x8xf32> -> vector<8x8xf32>
    %cst_7 = arith.constant dense<0.000000e+00> : vector<8x8xf32>
    %15 = tpu.matmul %2, %4, %cst_7 {dimension_numbers = #tpu.dot_dimension_numbers<[1], [1], [0], [0], [0, 0, 1, 0], [], []>} : vector<8x32xf32>, vector<8x32xf32>, vector<8x8xf32> -> vector<8x8xf32>
    %16 = vector.broadcast %12 : vector<8x1xf32> to vector<8x8xf32>
    %17 = vector.broadcast %10 : vector<1x8xf32> to vector<8x8xf32>
    %18 = arith.addf %16, %17 : vector<8x8xf32>
    %cst_8 = arith.constant 2.000000e+00 : f32
    %19 = vector.broadcast %cst_8 : f32 to vector<8x8xf32>
    %20 = arith.mulf %19, %14 : vector<8x8xf32>
    %21 = arith.subf %18, %20 : vector<8x8xf32>
    %cst_9 = arith.constant 0.000000e+00 : f32
    %22 = vector.broadcast %cst_9 : f32 to vector<8x8xf32>
    %23 = arith.maximumf %21, %22 : vector<8x8xf32>
    %24 = vector.broadcast %8 : vector<8x1xf32> to vector<8x8xf32>
    %25 = vector.broadcast %13 : vector<1x8xf32> to vector<8x8xf32>
    %26 = arith.addf %24, %25 : vector<8x8xf32>
    %cst_10 = arith.constant 2.000000e+00 : f32
    %27 = vector.broadcast %cst_10 : f32 to vector<8x8xf32>
    %28 = arith.mulf %27, %15 : vector<8x8xf32>
    %29 = arith.subf %26, %28 : vector<8x8xf32>
    %cst_11 = arith.constant 0.000000e+00 : f32
    %30 = vector.broadcast %cst_11 : f32 to vector<8x8xf32>
    %31 = arith.maximumf %29, %30 : vector<8x8xf32>
    %32 = tpu.iota {dimensions = array<i32: 0>} : vector<8x1xi32>
    %33 = tpu.iota {dimensions = array<i32: 1>} : vector<1x8xi32>
    %c0_12 = arith.constant 0 : index
    %c0_13 = arith.constant 0 : index
    %34 = vector.load %arg2[%c0_12, %c0_13] : memref<8x1xi32, #tpu.memory_space<vmem>>, vector<8x1xi32>
    %c0_14 = arith.constant 0 : index
    %c0_15 = arith.constant 0 : index
    %35 = vector.load %arg3[%c0_14, %c0_15] : memref<1x8xi32, #tpu.memory_space<vmem>>, vector<1x8xi32>
    %cst_16 = arith.constant 0.000000e+00 : f32
    %36 = vector.broadcast %cst_16 : f32 to vector<1x1xf32>
    %cst_17 = arith.constant 0.000000e+00 : f32
    %37 = vector.broadcast %cst_17 : f32 to vector<1x1xf32>
    %cst_18 = arith.constant 0.000000e+00 : f32
    %38 = vector.broadcast %cst_18 : f32 to vector<1x1xf32>
    %c0_i32 = arith.constant 0 : i32
    %39 = arith.addi %1, %c0_i32 : i32
    %40 = arith.index_cast %39 : i32 to index
    %41 = memref.load %arg1[%40] : memref<8xi32, #tpu.memory_space<smem>>
    %42 = vector.broadcast %39 : i32 to vector<8x1xi32>
    %43 = arith.cmpi ne, %32, %42 : vector<8x1xi32>
    %44 = vector.broadcast %41 : i32 to vector<8x1xi32>
    %45 = arith.cmpi eq, %34, %44 : vector<8x1xi32>
    %46 = arith.andi %43, %45 : vector<8x1xi1>
    %47 = vector.broadcast %39 : i32 to vector<1x8xi32>
    %48 = arith.cmpi ne, %33, %47 : vector<1x8xi32>
    %49 = vector.broadcast %41 : i32 to vector<1x8xi32>
    %50 = arith.cmpi ne, %35, %49 : vector<1x8xi32>
    %51 = arith.andi %48, %50 : vector<1x8xi1>
    %52 = arith.extui %46 : vector<8x1xi1> to vector<8x1xi32>
    %53 = arith.sitofp %52 : vector<8x1xi32> to vector<8x1xf32>
    %cst_19 = arith.constant dense<0.000000e+00> : vector<1xf32>
    %54 = vector.multi_reduction <add>, %53, %cst_19 [0] : vector<8x1xf32> to vector<1xf32>
    %55 = vector.shape_cast %54 : vector<1xf32> to vector<1x1xf32>
    %56 = arith.extui %51 : vector<1x8xi1> to vector<1x8xi32>
    %57 = arith.sitofp %56 : vector<1x8xi32> to vector<1x8xf32>
    %cst_20 = arith.constant dense<0.000000e+00> : vector<1xf32>
    %58 = vector.multi_reduction <add>, %57, %cst_20 [1] : vector<1x8xf32> to vector<1xf32>
    %59 = vector.shape_cast %58 : vector<1xf32> to vector<1x1xf32>
    %60 = arith.mulf %55, %59 : vector<1x1xf32>
    %61 = arith.addf %38, %60 : vector<1x1xf32>
    %62 = vector.extract_strided_slice %31 {offsets = [0, 0], sizes = [8, 1], strides = [1, 1]} : vector<8x8xf32> to vector<8x1xf32>
    %cst_21 = arith.constant 5.000000e-01 : f32
    %63 = vector.broadcast %cst_21 : f32 to vector<8x1xf32>
    %64 = arith.addf %62, %63 : vector<8x1xf32>
    %cst_22 = arith.constant -1.000000e+30 : f32
    %65 = vector.broadcast %cst_22 : f32 to vector<8x1xf32>
    %66 = arith.select %46, %64, %65 : vector<8x1xi1>, vector<8x1xf32>
    %67 = vector.extract_strided_slice %23 {offsets = [0, 0], sizes = [1, 8], strides = [1, 1]} : vector<8x8xf32> to vector<1x8xf32>
    %cst_23 = arith.constant 1.000000e+30 : f32
    %68 = vector.broadcast %cst_23 : f32 to vector<1x8xf32>
    %69 = arith.select %51, %67, %68 : vector<1x8xi1>, vector<1x8xf32>
    %70 = vector.broadcast %66 : vector<8x1xf32> to vector<8x8xf32>
    %71 = vector.broadcast %69 : vector<1x8xf32> to vector<8x8xf32>
    %72 = arith.subf %70, %71 : vector<8x8xf32>
    %cst_24 = arith.constant 0.000000e+00 : f32
    %73 = vector.broadcast %cst_24 : f32 to vector<8x8xf32>
    %74 = arith.maximumf %72, %73 : vector<8x8xf32>
    %cst_25 = arith.constant dense<0.000000e+00> : vector<8xf32>
    %75 = vector.multi_reduction <add>, %74, %cst_25 [1] : vector<8x8xf32> to vector<8xf32>
    %76 = vector.shape_cast %75 : vector<8xf32> to vector<8x1xf32>
    %cst_26 = arith.constant dense<0.000000e+00> : vector<1xf32>
    %77 = vector.multi_reduction <add>, %76, %cst_26 [0] : vector<8x1xf32> to vector<1xf32>
    %78 = vector.shape_cast %77 : vector<1xf32> to vector<1x1xf32>
    %79 = arith.addf %36, %78 : vector<1x1xf32>
    %cst_27 = arith.constant 1.000000e-16 : f32
    %80 = vector.broadcast %cst_27 : f32 to vector<8x8xf32>
    %81 = arith.cmpf ogt, %74, %80 : vector<8x8xf32>
    %82 = arith.extui %81 : vector<8x8xi1> to vector<8x8xi32>
    %83 = arith.sitofp %82 : vector<8x8xi32> to vector<8x8xf32>
    %cst_28 = arith.constant dense<0.000000e+00> : vector<8xf32>
    %84 = vector.multi_reduction <add>, %83, %cst_28 [1] : vector<8x8xf32> to vector<8xf32>
    %85 = vector.shape_cast %84 : vector<8xf32> to vector<8x1xf32>
    %cst_29 = arith.constant dense<0.000000e+00> : vector<1xf32>
    %86 = vector.multi_reduction <add>, %85, %cst_29 [0] : vector<8x1xf32> to vector<1xf32>
    %87 = vector.shape_cast %86 : vector<1xf32> to vector<1x1xf32>
    %88 = arith.addf %37, %87 : vector<1x1xf32>
    %c1_i32 = arith.constant 1 : i32
    %89 = arith.addi %1, %c1_i32 : i32
    %90 = arith.index_cast %89 : i32 to index
    %91 = memref.load %arg1[%90] : memref<8xi32, #tpu.memory_space<smem>>
    %92 = vector.broadcast %89 : i32 to vector<8x1xi32>
    %93 = arith.cmpi ne, %32, %92 : vector<8x1xi32>
    %94 = vector.broadcast %91 : i32 to vector<8x1xi32>
    %95 = arith.cmpi eq, %34, %94 : vector<8x1xi32>
    %96 = arith.andi %93, %95 : vector<8x1xi1>
    %97 = vector.broadcast %89 : i32 to vector<1x8xi32>
    %98 = arith.cmpi ne, %33, %97 : vector<1x8xi32>
    %99 = vector.broadcast %91 : i32 to vector<1x8xi32>
    %100 = arith.cmpi ne, %35, %99 : vector<1x8xi32>
    %101 = arith.andi %98, %100 : vector<1x8xi1>
    %102 = arith.extui %96 : vector<8x1xi1> to vector<8x1xi32>
    %103 = arith.sitofp %102 : vector<8x1xi32> to vector<8x1xf32>
    %cst_30 = arith.constant dense<0.000000e+00> : vector<1xf32>
    %104 = vector.multi_reduction <add>, %103, %cst_30 [0] : vector<8x1xf32> to vector<1xf32>
    %105 = vector.shape_cast %104 : vector<1xf32> to vector<1x1xf32>
    %106 = arith.extui %101 : vector<1x8xi1> to vector<1x8xi32>
    %107 = arith.sitofp %106 : vector<1x8xi32> to vector<1x8xf32>
    %cst_31 = arith.constant dense<0.000000e+00> : vector<1xf32>
    %108 = vector.multi_reduction <add>, %107, %cst_31 [1] : vector<1x8xf32> to vector<1xf32>
    %109 = vector.shape_cast %108 : vector<1xf32> to vector<1x1xf32>
    %110 = arith.mulf %105, %109 : vector<1x1xf32>
    %111 = arith.addf %61, %110 : vector<1x1xf32>
    %112 = vector.extract_strided_slice %31 {offsets = [0, 1], sizes = [8, 1], strides = [1, 1]} : vector<8x8xf32> to vector<8x1xf32>
    %cst_32 = arith.constant 5.000000e-01 : f32
    %113 = vector.broadcast %cst_32 : f32 to vector<8x1xf32>
    %114 = arith.addf %112, %113 : vector<8x1xf32>
    %cst_33 = arith.constant -1.000000e+30 : f32
    %115 = vector.broadcast %cst_33 : f32 to vector<8x1xf32>
    %116 = arith.select %96, %114, %115 : vector<8x1xi1>, vector<8x1xf32>
    %117 = vector.extract_strided_slice %23 {offsets = [1, 0], sizes = [1, 8], strides = [1, 1]} : vector<8x8xf32> to vector<1x8xf32>
    %cst_34 = arith.constant 1.000000e+30 : f32
    %118 = vector.broadcast %cst_34 : f32 to vector<1x8xf32>
    %119 = arith.select %101, %117, %118 : vector<1x8xi1>, vector<1x8xf32>
    %120 = vector.broadcast %116 : vector<8x1xf32> to vector<8x8xf32>
    %121 = vector.broadcast %119 : vector<1x8xf32> to vector<8x8xf32>
    %122 = arith.subf %120, %121 : vector<8x8xf32>
    %cst_35 = arith.constant 0.000000e+00 : f32
    %123 = vector.broadcast %cst_35 : f32 to vector<8x8xf32>
    %124 = arith.maximumf %122, %123 : vector<8x8xf32>
    %cst_36 = arith.constant dense<0.000000e+00> : vector<8xf32>
    %125 = vector.multi_reduction <add>, %124, %cst_36 [1] : vector<8x8xf32> to vector<8xf32>
    %126 = vector.shape_cast %125 : vector<8xf32> to vector<8x1xf32>
    %cst_37 = arith.constant dense<0.000000e+00> : vector<1xf32>
    %127 = vector.multi_reduction <add>, %126, %cst_37 [0] : vector<8x1xf32> to vector<1xf32>
    %128 = vector.shape_cast %127 : vector<1xf32> to vector<1x1xf32>
    %129 = arith.addf %79, %128 : vector<1x1xf32>
    %cst_38 = arith.constant 1.000000e-16 : f32
    %130 = vector.broadcast %cst_38 : f32 to vector<8x8xf32>
    %131 = arith.cmpf ogt, %124, %130 : vector<8x8xf32>
    %132 = arith.extui %131 : vector<8x8xi1> to vector<8x8xi32>
    %133 = arith.sitofp %132 : vector<8x8xi32> to vector<8x8xf32>
    %cst_39 = arith.constant dense<0.000000e+00> : vector<8xf32>
    %134 = vector.multi_reduction <add>, %133, %cst_39 [1] : vector<8x8xf32> to vector<8xf32>
    %135 = vector.shape_cast %134 : vector<8xf32> to vector<8x1xf32>
    %cst_40 = arith.constant dense<0.000000e+00> : vector<1xf32>
    %136 = vector.multi_reduction <add>, %135, %cst_40 [0] : vector<8x1xf32> to vector<1xf32>
    %137 = vector.shape_cast %136 : vector<1xf32> to vector<1x1xf32>
    %138 = arith.addf %88, %137 : vector<1x1xf32>
    %c2_i32 = arith.constant 2 : i32
    %139 = arith.addi %1, %c2_i32 : i32
    %140 = arith.index_cast %139 : i32 to index
    %141 = memref.load %arg1[%140] : memref<8xi32, #tpu.memory_space<smem>>
    %142 = vector.broadcast %139 : i32 to vector<8x1xi32>
    %143 = arith.cmpi ne, %32, %142 : vector<8x1xi32>
    %144 = vector.broadcast %141 : i32 to vector<8x1xi32>
    %145 = arith.cmpi eq, %34, %144 : vector<8x1xi32>
    %146 = arith.andi %143, %145 : vector<8x1xi1>
    %147 = vector.broadcast %139 : i32 to vector<1x8xi32>
    %148 = arith.cmpi ne, %33, %147 : vector<1x8xi32>
    %149 = vector.broadcast %141 : i32 to vector<1x8xi32>
    %150 = arith.cmpi ne, %35, %149 : vector<1x8xi32>
    %151 = arith.andi %148, %150 : vector<1x8xi1>
    %152 = arith.extui %146 : vector<8x1xi1> to vector<8x1xi32>
    %153 = arith.sitofp %152 : vector<8x1xi32> to vector<8x1xf32>
    %cst_41 = arith.constant dense<0.000000e+00> : vector<1xf32>
    %154 = vector.multi_reduction <add>, %153, %cst_41 [0] : vector<8x1xf32> to vector<1xf32>
    %155 = vector.shape_cast %154 : vector<1xf32> to vector<1x1xf32>
    %156 = arith.extui %151 : vector<1x8xi1> to vector<1x8xi32>
    %157 = arith.sitofp %156 : vector<1x8xi32> to vector<1x8xf32>
    %cst_42 = arith.constant dense<0.000000e+00> : vector<1xf32>
    %158 = vector.multi_reduction <add>, %157, %cst_42 [1] : vector<1x8xf32> to vector<1xf32>
    %159 = vector.shape_cast %158 : vector<1xf32> to vector<1x1xf32>
    %160 = arith.mulf %155, %159 : vector<1x1xf32>
    %161 = arith.addf %111, %160 : vector<1x1xf32>
    %162 = vector.extract_strided_slice %31 {offsets = [0, 2], sizes = [8, 1], strides = [1, 1]} : vector<8x8xf32> to vector<8x1xf32>
    %cst_43 = arith.constant 5.000000e-01 : f32
    %163 = vector.broadcast %cst_43 : f32 to vector<8x1xf32>
    %164 = arith.addf %162, %163 : vector<8x1xf32>
    %cst_44 = arith.constant -1.000000e+30 : f32
    %165 = vector.broadcast %cst_44 : f32 to vector<8x1xf32>
    %166 = arith.select %146, %164, %165 : vector<8x1xi1>, vector<8x1xf32>
    %167 = vector.extract_strided_slice %23 {offsets = [2, 0], sizes = [1, 8], strides = [1, 1]} : vector<8x8xf32> to vector<1x8xf32>
    %cst_45 = arith.constant 1.000000e+30 : f32
    %168 = vector.broadcast %cst_45 : f32 to vector<1x8xf32>
    %169 = arith.select %151, %167, %168 : vector<1x8xi1>, vector<1x8xf32>
    %170 = vector.broadcast %166 : vector<8x1xf32> to vector<8x8xf32>
    %171 = vector.broadcast %169 : vector<1x8xf32> to vector<8x8xf32>
    %172 = arith.subf %170, %171 : vector<8x8xf32>
    %cst_46 = arith.constant 0.000000e+00 : f32
    %173 = vector.broadcast %cst_46 : f32 to vector<8x8xf32>
    %174 = arith.maximumf %172, %173 : vector<8x8xf32>
    %cst_47 = arith.constant dense<0.000000e+00> : vector<8xf32>
    %175 = vector.multi_reduction <add>, %174, %cst_47 [1] : vector<8x8xf32> to vector<8xf32>
    %176 = vector.shape_cast %175 : vector<8xf32> to vector<8x1xf32>
    %cst_48 = arith.constant dense<0.000000e+00> : vector<1xf32>
    %177 = vector.multi_reduction <add>, %176, %cst_48 [0] : vector<8x1xf32> to vector<1xf32>
    %178 = vector.shape_cast %177 : vector<1xf32> to vector<1x1xf32>
    %179 = arith.addf %129, %178 : vector<1x1xf32>
    %cst_49 = arith.constant 1.000000e-16 : f32
    %180 = vector.broadcast %cst_49 : f32 to vector<8x8xf32>
    %181 = arith.cmpf ogt, %174, %180 : vector<8x8xf32>
    %182 = arith.extui %181 : vector<8x8xi1> to vector<8x8xi32>
    %183 = arith.sitofp %182 : vector<8x8xi32> to vector<8x8xf32>
    %cst_50 = arith.constant dense<0.000000e+00> : vector<8xf32>
    %184 = vector.multi_reduction <add>, %183, %cst_50 [1] : vector<8x8xf32> to vector<8xf32>
    %185 = vector.shape_cast %184 : vector<8xf32> to vector<8x1xf32>
    %cst_51 = arith.constant dense<0.000000e+00> : vector<1xf32>
    %186 = vector.multi_reduction <add>, %185, %cst_51 [0] : vector<8x1xf32> to vector<1xf32>
    %187 = vector.shape_cast %186 : vector<1xf32> to vector<1x1xf32>
    %188 = arith.addf %138, %187 : vector<1x1xf32>
    %c3_i32 = arith.constant 3 : i32
    %189 = arith.addi %1, %c3_i32 : i32
    %190 = arith.index_cast %189 : i32 to index
    %191 = memref.load %arg1[%190] : memref<8xi32, #tpu.memory_space<smem>>
    %192 = vector.broadcast %189 : i32 to vector<8x1xi32>
    %193 = arith.cmpi ne, %32, %192 : vector<8x1xi32>
    %194 = vector.broadcast %191 : i32 to vector<8x1xi32>
    %195 = arith.cmpi eq, %34, %194 : vector<8x1xi32>
    %196 = arith.andi %193, %195 : vector<8x1xi1>
    %197 = vector.broadcast %189 : i32 to vector<1x8xi32>
    %198 = arith.cmpi ne, %33, %197 : vector<1x8xi32>
    %199 = vector.broadcast %191 : i32 to vector<1x8xi32>
    %200 = arith.cmpi ne, %35, %199 : vector<1x8xi32>
    %201 = arith.andi %198, %200 : vector<1x8xi1>
    %202 = arith.extui %196 : vector<8x1xi1> to vector<8x1xi32>
    %203 = arith.sitofp %202 : vector<8x1xi32> to vector<8x1xf32>
    %cst_52 = arith.constant dense<0.000000e+00> : vector<1xf32>
    %204 = vector.multi_reduction <add>, %203, %cst_52 [0] : vector<8x1xf32> to vector<1xf32>
    %205 = vector.shape_cast %204 : vector<1xf32> to vector<1x1xf32>
    %206 = arith.extui %201 : vector<1x8xi1> to vector<1x8xi32>
    %207 = arith.sitofp %206 : vector<1x8xi32> to vector<1x8xf32>
    %cst_53 = arith.constant dense<0.000000e+00> : vector<1xf32>
    %208 = vector.multi_reduction <add>, %207, %cst_53 [1] : vector<1x8xf32> to vector<1xf32>
    %209 = vector.shape_cast %208 : vector<1xf32> to vector<1x1xf32>
    %210 = arith.mulf %205, %209 : vector<1x1xf32>
    %211 = arith.addf %161, %210 : vector<1x1xf32>
    %212 = vector.extract_strided_slice %31 {offsets = [0, 3], sizes = [8, 1], strides = [1, 1]} : vector<8x8xf32> to vector<8x1xf32>
    %cst_54 = arith.constant 5.000000e-01 : f32
    %213 = vector.broadcast %cst_54 : f32 to vector<8x1xf32>
    %214 = arith.addf %212, %213 : vector<8x1xf32>
    %cst_55 = arith.constant -1.000000e+30 : f32
    %215 = vector.broadcast %cst_55 : f32 to vector<8x1xf32>
    %216 = arith.select %196, %214, %215 : vector<8x1xi1>, vector<8x1xf32>
    %217 = vector.extract_strided_slice %23 {offsets = [3, 0], sizes = [1, 8], strides = [1, 1]} : vector<8x8xf32> to vector<1x8xf32>
    %cst_56 = arith.constant 1.000000e+30 : f32
    %218 = vector.broadcast %cst_56 : f32 to vector<1x8xf32>
    %219 = arith.select %201, %217, %218 : vector<1x8xi1>, vector<1x8xf32>
    %220 = vector.broadcast %216 : vector<8x1xf32> to vector<8x8xf32>
    %221 = vector.broadcast %219 : vector<1x8xf32> to vector<8x8xf32>
    %222 = arith.subf %220, %221 : vector<8x8xf32>
    %cst_57 = arith.constant 0.000000e+00 : f32
    %223 = vector.broadcast %cst_57 : f32 to vector<8x8xf32>
    %224 = arith.maximumf %222, %223 : vector<8x8xf32>
    %cst_58 = arith.constant dense<0.000000e+00> : vector<8xf32>
    %225 = vector.multi_reduction <add>, %224, %cst_58 [1] : vector<8x8xf32> to vector<8xf32>
    %226 = vector.shape_cast %225 : vector<8xf32> to vector<8x1xf32>
    %cst_59 = arith.constant dense<0.000000e+00> : vector<1xf32>
    %227 = vector.multi_reduction <add>, %226, %cst_59 [0] : vector<8x1xf32> to vector<1xf32>
    %228 = vector.shape_cast %227 : vector<1xf32> to vector<1x1xf32>
    %229 = arith.addf %179, %228 : vector<1x1xf32>
    %cst_60 = arith.constant 1.000000e-16 : f32
    %230 = vector.broadcast %cst_60 : f32 to vector<8x8xf32>
    %231 = arith.cmpf ogt, %224, %230 : vector<8x8xf32>
    %232 = arith.extui %231 : vector<8x8xi1> to vector<8x8xi32>
    %233 = arith.sitofp %232 : vector<8x8xi32> to vector<8x8xf32>
    %cst_61 = arith.constant dense<0.000000e+00> : vector<8xf32>
    %234 = vector.multi_reduction <add>, %233, %cst_61 [1] : vector<8x8xf32> to vector<8xf32>
    %235 = vector.shape_cast %234 : vector<8xf32> to vector<8x1xf32>
    %cst_62 = arith.constant dense<0.000000e+00> : vector<1xf32>
    %236 = vector.multi_reduction <add>, %235, %cst_62 [0] : vector<8x1xf32> to vector<1xf32>
    %237 = vector.shape_cast %236 : vector<1xf32> to vector<1x1xf32>
    %238 = arith.addf %188, %237 : vector<1x1xf32>
    %c4_i32 = arith.constant 4 : i32
    %239 = arith.addi %1, %c4_i32 : i32
    %240 = arith.index_cast %239 : i32 to index
    %241 = memref.load %arg1[%240] : memref<8xi32, #tpu.memory_space<smem>>
    %242 = vector.broadcast %239 : i32 to vector<8x1xi32>
    %243 = arith.cmpi ne, %32, %242 : vector<8x1xi32>
    %244 = vector.broadcast %241 : i32 to vector<8x1xi32>
    %245 = arith.cmpi eq, %34, %244 : vector<8x1xi32>
    %246 = arith.andi %243, %245 : vector<8x1xi1>
    %247 = vector.broadcast %239 : i32 to vector<1x8xi32>
    %248 = arith.cmpi ne, %33, %247 : vector<1x8xi32>
    %249 = vector.broadcast %241 : i32 to vector<1x8xi32>
    %250 = arith.cmpi ne, %35, %249 : vector<1x8xi32>
    %251 = arith.andi %248, %250 : vector<1x8xi1>
    %252 = arith.extui %246 : vector<8x1xi1> to vector<8x1xi32>
    %253 = arith.sitofp %252 : vector<8x1xi32> to vector<8x1xf32>
    %cst_63 = arith.constant dense<0.000000e+00> : vector<1xf32>
    %254 = vector.multi_reduction <add>, %253, %cst_63 [0] : vector<8x1xf32> to vector<1xf32>
    %255 = vector.shape_cast %254 : vector<1xf32> to vector<1x1xf32>
    %256 = arith.extui %251 : vector<1x8xi1> to vector<1x8xi32>
    %257 = arith.sitofp %256 : vector<1x8xi32> to vector<1x8xf32>
    %cst_64 = arith.constant dense<0.000000e+00> : vector<1xf32>
    %258 = vector.multi_reduction <add>, %257, %cst_64 [1] : vector<1x8xf32> to vector<1xf32>
    %259 = vector.shape_cast %258 : vector<1xf32> to vector<1x1xf32>
    %260 = arith.mulf %255, %259 : vector<1x1xf32>
    %261 = arith.addf %211, %260 : vector<1x1xf32>
    %262 = vector.extract_strided_slice %31 {offsets = [0, 4], sizes = [8, 1], strides = [1, 1]} : vector<8x8xf32> to vector<8x1xf32>
    %cst_65 = arith.constant 5.000000e-01 : f32
    %263 = vector.broadcast %cst_65 : f32 to vector<8x1xf32>
    %264 = arith.addf %262, %263 : vector<8x1xf32>
    %cst_66 = arith.constant -1.000000e+30 : f32
    %265 = vector.broadcast %cst_66 : f32 to vector<8x1xf32>
    %266 = arith.select %246, %264, %265 : vector<8x1xi1>, vector<8x1xf32>
    %267 = vector.extract_strided_slice %23 {offsets = [4, 0], sizes = [1, 8], strides = [1, 1]} : vector<8x8xf32> to vector<1x8xf32>
    %cst_67 = arith.constant 1.000000e+30 : f32
    %268 = vector.broadcast %cst_67 : f32 to vector<1x8xf32>
    %269 = arith.select %251, %267, %268 : vector<1x8xi1>, vector<1x8xf32>
    %270 = vector.broadcast %266 : vector<8x1xf32> to vector<8x8xf32>
    %271 = vector.broadcast %269 : vector<1x8xf32> to vector<8x8xf32>
    %272 = arith.subf %270, %271 : vector<8x8xf32>
    %cst_68 = arith.constant 0.000000e+00 : f32
    %273 = vector.broadcast %cst_68 : f32 to vector<8x8xf32>
    %274 = arith.maximumf %272, %273 : vector<8x8xf32>
    %cst_69 = arith.constant dense<0.000000e+00> : vector<8xf32>
    %275 = vector.multi_reduction <add>, %274, %cst_69 [1] : vector<8x8xf32> to vector<8xf32>
    %276 = vector.shape_cast %275 : vector<8xf32> to vector<8x1xf32>
    %cst_70 = arith.constant dense<0.000000e+00> : vector<1xf32>
    %277 = vector.multi_reduction <add>, %276, %cst_70 [0] : vector<8x1xf32> to vector<1xf32>
    %278 = vector.shape_cast %277 : vector<1xf32> to vector<1x1xf32>
    %279 = arith.addf %229, %278 : vector<1x1xf32>
    %cst_71 = arith.constant 1.000000e-16 : f32
    %280 = vector.broadcast %cst_71 : f32 to vector<8x8xf32>
    %281 = arith.cmpf ogt, %274, %280 : vector<8x8xf32>
    %282 = arith.extui %281 : vector<8x8xi1> to vector<8x8xi32>
    %283 = arith.sitofp %282 : vector<8x8xi32> to vector<8x8xf32>
    %cst_72 = arith.constant dense<0.000000e+00> : vector<8xf32>
    %284 = vector.multi_reduction <add>, %283, %cst_72 [1] : vector<8x8xf32> to vector<8xf32>
    %285 = vector.shape_cast %284 : vector<8xf32> to vector<8x1xf32>
    %cst_73 = arith.constant dense<0.000000e+00> : vector<1xf32>
    %286 = vector.multi_reduction <add>, %285, %cst_73 [0] : vector<8x1xf32> to vector<1xf32>
    %287 = vector.shape_cast %286 : vector<1xf32> to vector<1x1xf32>
    %288 = arith.addf %238, %287 : vector<1x1xf32>
    %c5_i32 = arith.constant 5 : i32
    %289 = arith.addi %1, %c5_i32 : i32
    %290 = arith.index_cast %289 : i32 to index
    %291 = memref.load %arg1[%290] : memref<8xi32, #tpu.memory_space<smem>>
    %292 = vector.broadcast %289 : i32 to vector<8x1xi32>
    %293 = arith.cmpi ne, %32, %292 : vector<8x1xi32>
    %294 = vector.broadcast %291 : i32 to vector<8x1xi32>
    %295 = arith.cmpi eq, %34, %294 : vector<8x1xi32>
    %296 = arith.andi %293, %295 : vector<8x1xi1>
    %297 = vector.broadcast %289 : i32 to vector<1x8xi32>
    %298 = arith.cmpi ne, %33, %297 : vector<1x8xi32>
    %299 = vector.broadcast %291 : i32 to vector<1x8xi32>
    %300 = arith.cmpi ne, %35, %299 : vector<1x8xi32>
    %301 = arith.andi %298, %300 : vector<1x8xi1>
    %302 = arith.extui %296 : vector<8x1xi1> to vector<8x1xi32>
    %303 = arith.sitofp %302 : vector<8x1xi32> to vector<8x1xf32>
    %cst_74 = arith.constant dense<0.000000e+00> : vector<1xf32>
    %304 = vector.multi_reduction <add>, %303, %cst_74 [0] : vector<8x1xf32> to vector<1xf32>
    %305 = vector.shape_cast %304 : vector<1xf32> to vector<1x1xf32>
    %306 = arith.extui %301 : vector<1x8xi1> to vector<1x8xi32>
    %307 = arith.sitofp %306 : vector<1x8xi32> to vector<1x8xf32>
    %cst_75 = arith.constant dense<0.000000e+00> : vector<1xf32>
    %308 = vector.multi_reduction <add>, %307, %cst_75 [1] : vector<1x8xf32> to vector<1xf32>
    %309 = vector.shape_cast %308 : vector<1xf32> to vector<1x1xf32>
    %310 = arith.mulf %305, %309 : vector<1x1xf32>
    %311 = arith.addf %261, %310 : vector<1x1xf32>
    %312 = vector.extract_strided_slice %31 {offsets = [0, 5], sizes = [8, 1], strides = [1, 1]} : vector<8x8xf32> to vector<8x1xf32>
    %cst_76 = arith.constant 5.000000e-01 : f32
    %313 = vector.broadcast %cst_76 : f32 to vector<8x1xf32>
    %314 = arith.addf %312, %313 : vector<8x1xf32>
    %cst_77 = arith.constant -1.000000e+30 : f32
    %315 = vector.broadcast %cst_77 : f32 to vector<8x1xf32>
    %316 = arith.select %296, %314, %315 : vector<8x1xi1>, vector<8x1xf32>
    %317 = vector.extract_strided_slice %23 {offsets = [5, 0], sizes = [1, 8], strides = [1, 1]} : vector<8x8xf32> to vector<1x8xf32>
    %cst_78 = arith.constant 1.000000e+30 : f32
    %318 = vector.broadcast %cst_78 : f32 to vector<1x8xf32>
    %319 = arith.select %301, %317, %318 : vector<1x8xi1>, vector<1x8xf32>
    %320 = vector.broadcast %316 : vector<8x1xf32> to vector<8x8xf32>
    %321 = vector.broadcast %319 : vector<1x8xf32> to vector<8x8xf32>
    %322 = arith.subf %320, %321 : vector<8x8xf32>
    %cst_79 = arith.constant 0.000000e+00 : f32
    %323 = vector.broadcast %cst_79 : f32 to vector<8x8xf32>
    %324 = arith.maximumf %322, %323 : vector<8x8xf32>
    %cst_80 = arith.constant dense<0.000000e+00> : vector<8xf32>
    %325 = vector.multi_reduction <add>, %324, %cst_80 [1] : vector<8x8xf32> to vector<8xf32>
    %326 = vector.shape_cast %325 : vector<8xf32> to vector<8x1xf32>
    %cst_81 = arith.constant dense<0.000000e+00> : vector<1xf32>
    %327 = vector.multi_reduction <add>, %326, %cst_81 [0] : vector<8x1xf32> to vector<1xf32>
    %328 = vector.shape_cast %327 : vector<1xf32> to vector<1x1xf32>
    %329 = arith.addf %279, %328 : vector<1x1xf32>
    %cst_82 = arith.constant 1.000000e-16 : f32
    %330 = vector.broadcast %cst_82 : f32 to vector<8x8xf32>
    %331 = arith.cmpf ogt, %324, %330 : vector<8x8xf32>
    %332 = arith.extui %331 : vector<8x8xi1> to vector<8x8xi32>
    %333 = arith.sitofp %332 : vector<8x8xi32> to vector<8x8xf32>
    %cst_83 = arith.constant dense<0.000000e+00> : vector<8xf32>
    %334 = vector.multi_reduction <add>, %333, %cst_83 [1] : vector<8x8xf32> to vector<8xf32>
    %335 = vector.shape_cast %334 : vector<8xf32> to vector<8x1xf32>
    %cst_84 = arith.constant dense<0.000000e+00> : vector<1xf32>
    %336 = vector.multi_reduction <add>, %335, %cst_84 [0] : vector<8x1xf32> to vector<1xf32>
    %337 = vector.shape_cast %336 : vector<1xf32> to vector<1x1xf32>
    %338 = arith.addf %288, %337 : vector<1x1xf32>
    %c6_i32 = arith.constant 6 : i32
    %339 = arith.addi %1, %c6_i32 : i32
    %340 = arith.index_cast %339 : i32 to index
    %341 = memref.load %arg1[%340] : memref<8xi32, #tpu.memory_space<smem>>
    %342 = vector.broadcast %339 : i32 to vector<8x1xi32>
    %343 = arith.cmpi ne, %32, %342 : vector<8x1xi32>
    %344 = vector.broadcast %341 : i32 to vector<8x1xi32>
    %345 = arith.cmpi eq, %34, %344 : vector<8x1xi32>
    %346 = arith.andi %343, %345 : vector<8x1xi1>
    %347 = vector.broadcast %339 : i32 to vector<1x8xi32>
    %348 = arith.cmpi ne, %33, %347 : vector<1x8xi32>
    %349 = vector.broadcast %341 : i32 to vector<1x8xi32>
    %350 = arith.cmpi ne, %35, %349 : vector<1x8xi32>
    %351 = arith.andi %348, %350 : vector<1x8xi1>
    %352 = arith.extui %346 : vector<8x1xi1> to vector<8x1xi32>
    %353 = arith.sitofp %352 : vector<8x1xi32> to vector<8x1xf32>
    %cst_85 = arith.constant dense<0.000000e+00> : vector<1xf32>
    %354 = vector.multi_reduction <add>, %353, %cst_85 [0] : vector<8x1xf32> to vector<1xf32>
    %355 = vector.shape_cast %354 : vector<1xf32> to vector<1x1xf32>
    %356 = arith.extui %351 : vector<1x8xi1> to vector<1x8xi32>
    %357 = arith.sitofp %356 : vector<1x8xi32> to vector<1x8xf32>
    %cst_86 = arith.constant dense<0.000000e+00> : vector<1xf32>
    %358 = vector.multi_reduction <add>, %357, %cst_86 [1] : vector<1x8xf32> to vector<1xf32>
    %359 = vector.shape_cast %358 : vector<1xf32> to vector<1x1xf32>
    %360 = arith.mulf %355, %359 : vector<1x1xf32>
    %361 = arith.addf %311, %360 : vector<1x1xf32>
    %362 = vector.extract_strided_slice %31 {offsets = [0, 6], sizes = [8, 1], strides = [1, 1]} : vector<8x8xf32> to vector<8x1xf32>
    %cst_87 = arith.constant 5.000000e-01 : f32
    %363 = vector.broadcast %cst_87 : f32 to vector<8x1xf32>
    %364 = arith.addf %362, %363 : vector<8x1xf32>
    %cst_88 = arith.constant -1.000000e+30 : f32
    %365 = vector.broadcast %cst_88 : f32 to vector<8x1xf32>
    %366 = arith.select %346, %364, %365 : vector<8x1xi1>, vector<8x1xf32>
    %367 = vector.extract_strided_slice %23 {offsets = [6, 0], sizes = [1, 8], strides = [1, 1]} : vector<8x8xf32> to vector<1x8xf32>
    %cst_89 = arith.constant 1.000000e+30 : f32
    %368 = vector.broadcast %cst_89 : f32 to vector<1x8xf32>
    %369 = arith.select %351, %367, %368 : vector<1x8xi1>, vector<1x8xf32>
    %370 = vector.broadcast %366 : vector<8x1xf32> to vector<8x8xf32>
    %371 = vector.broadcast %369 : vector<1x8xf32> to vector<8x8xf32>
    %372 = arith.subf %370, %371 : vector<8x8xf32>
    %cst_90 = arith.constant 0.000000e+00 : f32
    %373 = vector.broadcast %cst_90 : f32 to vector<8x8xf32>
    %374 = arith.maximumf %372, %373 : vector<8x8xf32>
    %cst_91 = arith.constant dense<0.000000e+00> : vector<8xf32>
    %375 = vector.multi_reduction <add>, %374, %cst_91 [1] : vector<8x8xf32> to vector<8xf32>
    %376 = vector.shape_cast %375 : vector<8xf32> to vector<8x1xf32>
    %cst_92 = arith.constant dense<0.000000e+00> : vector<1xf32>
    %377 = vector.multi_reduction <add>, %376, %cst_92 [0] : vector<8x1xf32> to vector<1xf32>
    %378 = vector.shape_cast %377 : vector<1xf32> to vector<1x1xf32>
    %379 = arith.addf %329, %378 : vector<1x1xf32>
    %cst_93 = arith.constant 1.000000e-16 : f32
    %380 = vector.broadcast %cst_93 : f32 to vector<8x8xf32>
    %381 = arith.cmpf ogt, %374, %380 : vector<8x8xf32>
    %382 = arith.extui %381 : vector<8x8xi1> to vector<8x8xi32>
    %383 = arith.sitofp %382 : vector<8x8xi32> to vector<8x8xf32>
    %cst_94 = arith.constant dense<0.000000e+00> : vector<8xf32>
    %384 = vector.multi_reduction <add>, %383, %cst_94 [1] : vector<8x8xf32> to vector<8xf32>
    %385 = vector.shape_cast %384 : vector<8xf32> to vector<8x1xf32>
    %cst_95 = arith.constant dense<0.000000e+00> : vector<1xf32>
    %386 = vector.multi_reduction <add>, %385, %cst_95 [0] : vector<8x1xf32> to vector<1xf32>
    %387 = vector.shape_cast %386 : vector<1xf32> to vector<1x1xf32>
    %388 = arith.addf %338, %387 : vector<1x1xf32>
    %c7_i32 = arith.constant 7 : i32
    %389 = arith.addi %1, %c7_i32 : i32
    %390 = arith.index_cast %389 : i32 to index
    %391 = memref.load %arg1[%390] : memref<8xi32, #tpu.memory_space<smem>>
    %392 = vector.broadcast %389 : i32 to vector<8x1xi32>
    %393 = arith.cmpi ne, %32, %392 : vector<8x1xi32>
    %394 = vector.broadcast %391 : i32 to vector<8x1xi32>
    %395 = arith.cmpi eq, %34, %394 : vector<8x1xi32>
    %396 = arith.andi %393, %395 : vector<8x1xi1>
    %397 = vector.broadcast %389 : i32 to vector<1x8xi32>
    %398 = arith.cmpi ne, %33, %397 : vector<1x8xi32>
    %399 = vector.broadcast %391 : i32 to vector<1x8xi32>
    %400 = arith.cmpi ne, %35, %399 : vector<1x8xi32>
    %401 = arith.andi %398, %400 : vector<1x8xi1>
    %402 = arith.extui %396 : vector<8x1xi1> to vector<8x1xi32>
    %403 = arith.sitofp %402 : vector<8x1xi32> to vector<8x1xf32>
    %cst_96 = arith.constant dense<0.000000e+00> : vector<1xf32>
    %404 = vector.multi_reduction <add>, %403, %cst_96 [0] : vector<8x1xf32> to vector<1xf32>
    %405 = vector.shape_cast %404 : vector<1xf32> to vector<1x1xf32>
    %406 = arith.extui %401 : vector<1x8xi1> to vector<1x8xi32>
    %407 = arith.sitofp %406 : vector<1x8xi32> to vector<1x8xf32>
    %cst_97 = arith.constant dense<0.000000e+00> : vector<1xf32>
    %408 = vector.multi_reduction <add>, %407, %cst_97 [1] : vector<1x8xf32> to vector<1xf32>
    %409 = vector.shape_cast %408 : vector<1xf32> to vector<1x1xf32>
    %410 = arith.mulf %405, %409 : vector<1x1xf32>
    %411 = arith.addf %361, %410 : vector<1x1xf32>
    %412 = vector.extract_strided_slice %31 {offsets = [0, 7], sizes = [8, 1], strides = [1, 1]} : vector<8x8xf32> to vector<8x1xf32>
    %cst_98 = arith.constant 5.000000e-01 : f32
    %413 = vector.broadcast %cst_98 : f32 to vector<8x1xf32>
    %414 = arith.addf %412, %413 : vector<8x1xf32>
    %cst_99 = arith.constant -1.000000e+30 : f32
    %415 = vector.broadcast %cst_99 : f32 to vector<8x1xf32>
    %416 = arith.select %396, %414, %415 : vector<8x1xi1>, vector<8x1xf32>
    %417 = vector.extract_strided_slice %23 {offsets = [7, 0], sizes = [1, 8], strides = [1, 1]} : vector<8x8xf32> to vector<1x8xf32>
    %cst_100 = arith.constant 1.000000e+30 : f32
    %418 = vector.broadcast %cst_100 : f32 to vector<1x8xf32>
    %419 = arith.select %401, %417, %418 : vector<1x8xi1>, vector<1x8xf32>
    %420 = vector.broadcast %416 : vector<8x1xf32> to vector<8x8xf32>
    %421 = vector.broadcast %419 : vector<1x8xf32> to vector<8x8xf32>
    %422 = arith.subf %420, %421 : vector<8x8xf32>
    %cst_101 = arith.constant 0.000000e+00 : f32
    %423 = vector.broadcast %cst_101 : f32 to vector<8x8xf32>
    %424 = arith.maximumf %422, %423 : vector<8x8xf32>
    %cst_102 = arith.constant dense<0.000000e+00> : vector<8xf32>
    %425 = vector.multi_reduction <add>, %424, %cst_102 [1] : vector<8x8xf32> to vector<8xf32>
    %426 = vector.shape_cast %425 : vector<8xf32> to vector<8x1xf32>
    %cst_103 = arith.constant dense<0.000000e+00> : vector<1xf32>
    %427 = vector.multi_reduction <add>, %426, %cst_103 [0] : vector<8x1xf32> to vector<1xf32>
    %428 = vector.shape_cast %427 : vector<1xf32> to vector<1x1xf32>
    %429 = arith.addf %379, %428 : vector<1x1xf32>
    %cst_104 = arith.constant 1.000000e-16 : f32
    %430 = vector.broadcast %cst_104 : f32 to vector<8x8xf32>
    %431 = arith.cmpf ogt, %424, %430 : vector<8x8xf32>
    %432 = arith.extui %431 : vector<8x8xi1> to vector<8x8xi32>
    %433 = arith.sitofp %432 : vector<8x8xi32> to vector<8x8xf32>
    %cst_105 = arith.constant dense<0.000000e+00> : vector<8xf32>
    %434 = vector.multi_reduction <add>, %433, %cst_105 [1] : vector<8x8xf32> to vector<8xf32>
    %435 = vector.shape_cast %434 : vector<8xf32> to vector<8x1xf32>
    %cst_106 = arith.constant dense<0.000000e+00> : vector<1xf32>
    %436 = vector.multi_reduction <add>, %435, %cst_106 [0] : vector<8x1xf32> to vector<1xf32>
    %437 = vector.shape_cast %436 : vector<1xf32> to vector<1x1xf32>
    %438 = arith.addf %388, %437 : vector<1x1xf32>
    %439 = tpu.iota {dimensions = array<i32: 1>} : vector<8x128xi32>
    %440 = tpu.iota {dimensions = array<i32: 0>} : vector<8x128xi32>
    %c0_i32_107 = arith.constant 0 : i32
    %441 = vector.broadcast %c0_i32_107 : i32 to vector<8x128xi32>
    %442 = arith.cmpi eq, %440, %441 : vector<8x128xi32>
    %c0_i32_108 = arith.constant 0 : i32
    %443 = vector.broadcast %c0_i32_108 : i32 to vector<8x128xi32>
    %444 = arith.cmpi eq, %439, %443 : vector<8x128xi32>
    %445 = arith.andi %442, %444 : vector<8x128xi1>
    %cst_109 = arith.constant 0.000000e+00 : f32
    %446 = vector.shape_cast %429 : vector<1x1xf32> to vector<1x1xf32>
    %447 = vector.broadcast %446 : vector<1x1xf32> to vector<8x128xf32>
    %448 = vector.broadcast %cst_109 : f32 to vector<8x128xf32>
    %449 = arith.select %445, %447, %448 : vector<8x128xi1>, vector<8x128xf32>
    %c1_i32_110 = arith.constant 1 : i32
    %450 = vector.broadcast %c1_i32_110 : i32 to vector<8x128xi32>
    %451 = arith.cmpi eq, %439, %450 : vector<8x128xi32>
    %452 = arith.andi %442, %451 : vector<8x128xi1>
    %cst_111 = arith.constant 0.000000e+00 : f32
    %453 = vector.shape_cast %438 : vector<1x1xf32> to vector<1x1xf32>
    %454 = vector.broadcast %453 : vector<1x1xf32> to vector<8x128xf32>
    %455 = vector.broadcast %cst_111 : f32 to vector<8x128xf32>
    %456 = arith.select %452, %454, %455 : vector<8x128xi1>, vector<8x128xf32>
    %457 = arith.addf %449, %456 : vector<8x128xf32>
    %c2_i32_112 = arith.constant 2 : i32
    %458 = vector.broadcast %c2_i32_112 : i32 to vector<8x128xi32>
    %459 = arith.cmpi eq, %439, %458 : vector<8x128xi32>
    %460 = arith.andi %442, %459 : vector<8x128xi1>
    %cst_113 = arith.constant 0.000000e+00 : f32
    %461 = vector.shape_cast %411 : vector<1x1xf32> to vector<1x1xf32>
    %462 = vector.broadcast %461 : vector<1x1xf32> to vector<8x128xf32>
    %463 = vector.broadcast %cst_113 : f32 to vector<8x128xf32>
    %464 = arith.select %460, %462, %463 : vector<8x128xi1>, vector<8x128xf32>
    %465 = arith.addf %457, %464 : vector<8x128xf32>
    %c0_114 = arith.constant 0 : index
    %c0_115 = arith.constant 0 : index
    %466 = vector.load %arg5[%c0_114, %c0_115] : memref<8x128xf32, #tpu.memory_space<vmem>>, vector<8x128xf32>
    tpu.vector_store %arg5[%c0_114, %c0_115], %465 {strides = array<i32>} : memref<8x128xf32, #tpu.memory_space<vmem>>, vector<8x128xf32>,
    return
  }
  func.func @transform_0(%arg0: i32, %arg1: memref<8xi32, #tpu.memory_space<smem>>) -> (i32, i32) {
    %c0_i32 = arith.constant 0 : i32
    %c0_i32_0 = arith.constant 0 : i32
    %c0_i32_1 = arith.constant 0 : i32
    return %c0_i32, %c0_i32_0 : i32, i32
  }
  func.func @transform_1(%arg0: i32, %arg1: memref<8xi32, #tpu.memory_space<smem>>) -> (i32, i32) {
    %c0_i32 = arith.constant 0 : i32
    %c0_i32_0 = arith.constant 0 : i32
    %c0_i32_1 = arith.constant 0 : i32
    return %c0_i32, %c0_i32_0 : i32, i32
  }
  func.func @transform_2(%arg0: i32, %arg1: memref<8xi32, #tpu.memory_space<smem>>) -> (i32, i32) {
    %c0_i32 = arith.constant 0 : i32
    %c0_i32_0 = arith.constant 0 : i32
    %c0_i32_1 = arith.constant 0 : i32
    return %c0_i32, %c0_i32_0 : i32, i32
  }
  func.func @transform_3(%arg0: i32, %arg1: memref<8xi32, #tpu.memory_space<smem>>) -> (i32, i32) {
    %c0_i32 = arith.constant 0 : i32
    %c0_i32_0 = arith.constant 0 : i32
    return %arg0, %c0_i32 : i32, i32
  }
}

</mosaic_0001>

<llo_original>
// kernel: all_triplet_miner.1
$region0: #{all_triplet_miner.1}
  #allocation0 [shape = 'u32[]', space=smem, size = 0x4, offset = 0x4, fixed_abs, tag = 'smem constant byte address 0x4 - core index']
  #allocation1 [shape = 'u32[72,128]{1,0:T(1,128)}', space=vmem, size = 0x9000, scoped, tag = 'internal scratch']
  #allocation2 [shape = 's32[1]{0}', space=sflag, size = 0x4, scoped, tag = 'scoped memory for all_triplet_miner.1']
  #allocation3 [shape = 'u8[512]{0}', space=smem, size = 0x200, scoped, tag = 'prefetched SMEM operand 0']
  %s0 = inlined_call_operand.vmem [shape: s32[8], index: 0, kind: input, shape index: {}, may-alias: {0,2}]
  %s1 = inlined_call_operand.vmem [shape: s32[8,1], index: 1, kind: input, shape index: {}]
  %s2 = inlined_call_operand.vmem [shape: s32[1,8], index: 2, kind: input, shape index: {}, may-alias: {0,2}]
  %s3 = inlined_call_operand.vmem [shape: f32[8,32], index: 3, kind: input, shape index: {}]
  %s4 = inlined_call_operand.vmem [shape: f32[8,128], index: 4, kind: output, shape index: {}]
  %s5 = sld [smem:[#allocation0]]
  $region22: #{all_triplet_miner.1} parent=0
    _
  %s7 = ssub.s32 1, %s5
  %s8 = scalar_select 0, %s7, %s5
  %s10 = sshll.u32 %s0, 4
  %s11 = int_to_ptr.vmem [resolvable:$true] %s10
  %13 = dma.vmem_to_smem %s11, 16, [#allocation3], [#allocation2]
  %15 = dma.done [#allocation2], 16
  %16 = sfence
  // Predicated region
  $region2: #{all_triplet_miner.1} parent=0 // pred_check
    _
  $region3: #{all_triplet_miner.1} parent=0 // pred_check_branch
    %18 = sbr.rel (0) target = $region5
  $region4: #{all_triplet_miner.1} parent=0 // pred_region
    _
  $region5: #{all_triplet_miner.1} parent=0 // pred_fallthru
    _
  // Predicated region
  $region6: #{all_triplet_miner.1} parent=0 // pred_check
    _
  $region7: #{all_triplet_miner.1} parent=0 // pred_check_branch
    %20 = sbr.rel (0) target = $region9
  $region8: #{all_triplet_miner.1} parent=0 // pred_region
    _
  $region9: #{all_triplet_miner.1} parent=0 // pred_fallthru
    _
  // Predicated region
  $region10: #{all_triplet_miner.1} parent=0 // pred_check
    _
  $region11: #{all_triplet_miner.1} parent=0 // pred_check_branch
    %22 = sbr.rel (0) target = $region13
  $region12: #{all_triplet_miner.1} parent=0 // pred_region
    _
  $region13: #{all_triplet_miner.1} parent=0 // pred_fallthru
    _
  %s23 = smul.u32 0, 8
  %v24 = vld [vmem:[%s3] sm:$0xff]
  %s25 = scalar_lea.vmem %s3, %s23
  %v26 = vld [vmem:[%s25] sm:$0xff]
  %v27 = vmul.f32 %v24, %v24
  %v28 = vmul.f32 %v26, %v26
  %vm29 = vcmask 261120
  %v30 = vsel %vm29, %v27, 0.0
  %31 = vadd.xlane.f32.xlu0 %v30
  %v32 = vpop.xlane.xlu0 %31
  %v34 = vsel %vm29, 1.0, 0
  %v37 = vsel %vm29, %v27, 0
  %39 = vmatpush.xpose.msra.mxu0 0.0
  %40 = vmatpush.xpose.msra.mxu0 0.0
  %41 = vmatpush.xpose.msra.mxu0 0.0
  %42 = vmatpush.xpose.msra.mxu0 0.0
  %43 = vmatpush.xpose.msra.mxu0 0.0
  %44 = vmatpush.xpose.msra.mxu0 0.0
  %45 = vmatpush.xpose.msra.mxu0 0.0
  %46 = vmatpush.xpose.msra.mxu0 0.0
  %47 = vmatpush.xpose.msra.mxu0 0.0
  %48 = vmatpush.xpose.msra.mxu0 0.0
  %49 = vmatpush.xpose.msra.mxu0 0.0
  %50 = vmatpush.xpose.msra.mxu0 0.0
  %51 = vmatpush.xpose.msra.mxu0 0.0
  %52 = vmatpush.xpose.msra.mxu0 0.0
  %53 = vmatpush.xpose.msra.mxu0 0.0
  %54 = vmatpush.xpose.msra.mxu0 %v37
  %55 = vmatmul.f32.gmra.mxu0 %v34
  %v56 = vpop.f32.mrf.mxu0
  %v57 = vadd.f32 0.0, %v56
  %58 = vdwg.mxu0
  %v59 = vsel %vm29, %v28, 0.0
  %60 = vadd.xlane.f32.xlu0 %v59
  %v61 = vpop.xlane.xlu0 %60
  %v63 = vsel %vm29, %v28, 0
  %65 = vmatpush.xpose.msra.mxu0 0.0
  %66 = vmatpush.xpose.msra.mxu0 0.0
  %67 = vmatpush.xpose.msra.mxu0 0.0
  %68 = vmatpush.xpose.msra.mxu0 0.0
  %69 = vmatpush.xpose.msra.mxu0 0.0
  %70 = vmatpush.xpose.msra.mxu0 0.0
  %71 = vmatpush.xpose.msra.mxu0 0.0
  %72 = vmatpush.xpose.msra.mxu0 0.0
  %73 = vmatpush.xpose.msra.mxu0 0.0
  %74 = vmatpush.xpose.msra.mxu0 0.0
  %75 = vmatpush.xpose.msra.mxu0 0.0
  %76 = vmatpush.xpose.msra.mxu0 0.0
  %77 = vmatpush.xpose.msra.mxu0 0.0
  %78 = vmatpush.xpose.msra.mxu0 0.0
  %79 = vmatpush.xpose.msra.mxu0 0.0
  %80 = vmatpush.xpose.msra.mxu0 %v63
  %81 = vmatmul.f32.gmra.mxu0 %v34
  %v82 = vpop.f32.mrf.mxu0
  %v83 = vadd.f32 0.0, %v82
  %84 = vdwg.mxu0
  %v86 = vsel %vm29, %v26, 0
  %v89 = vsel %vm29, %v24, 0
  %91 = vmatpush.xpose.msra.mxu0 0.0
  %92 = vmatpush.xpose.msra.mxu0 0.0
  %93 = vmatpush.xpose.msra.mxu0 0.0
  %94 = vmatpush.xpose.msra.mxu0 0.0
  %95 = vmatpush.xpose.msra.mxu0 0.0
  %96 = vmatpush.xpose.msra.mxu0 0.0
  %97 = vmatpush.xpose.msra.mxu0 0.0
  %98 = vmatpush.xpose.msra.mxu0 0.0
  %99 = vmatpush.xpose.msra.mxu0 0.0
  %100 = vmatpush.xpose.msra.mxu0 0.0
  %101 = vmatpush.xpose.msra.mxu0 0.0
  %102 = vmatpush.xpose.msra.mxu0 0.0
  %103 = vmatpush.xpose.msra.mxu0 0.0
  %104 = vmatpush.xpose.msra.mxu0 0.0
  %105 = vmatpush.xpose.msra.mxu0 0.0
  %106 = vmatpush.xpose.msra.mxu0 %v89
  %107 = vmatmul.f32.gmra.mxu0 %v86
  %v108 = vpop.f32.mrf.mxu0
  %v109 = vadd.f32 0.0, %v108
  %110 = vdwg.mxu0
  %111 = vmatpush.xpose.msra.mxu0 0.0
  %112 = vmatpush.xpose.msra.mxu0 0.0
  %113 = vmatpush.xpose.msra.mxu0 0.0
  %114 = vmatpush.xpose.msra.mxu0 0.0
  %115 = vmatpush.xpose.msra.mxu0 0.0
  %116 = vmatpush.xpose.msra.mxu0 0.0
  %117 = vmatpush.xpose.msra.mxu0 0.0
  %118 = vmatpush.xpose.msra.mxu0 0.0
  %119 = vmatpush.xpose.msra.mxu0 0.0
  %120 = vmatpush.xpose.msra.mxu0 0.0
  %121 = vmatpush.xpose.msra.mxu0 0.0
  %122 = vmatpush.xpose.msra.mxu0 0.0
  %123 = vmatpush.xpose.msra.mxu0 0.0
  %124 = vmatpush.xpose.msra.mxu0 0.0
  %125 = vmatpush.xpose.msra.mxu0 0.0
  %126 = vmatpush.xpose.msra.mxu0 %v86
  %127 = vmatmul.f32.gmra.mxu0 %v89
  %v128 = vpop.f32.mrf.mxu0
  %v129 = vadd.f32 0.0, %v128
  %130 = vdwg.mxu0
  %v131 = vperm.slane %v57, 0
  %v132 = vadd.f32 %v61, %v131
  %v133 = vmul.f32 %v109, 2.0
  %v134 = vsub.f32 %v132, %v133
  %v135 = vmax.f32 %v134, 0.0
  %v136 = vperm.slane %v83, 0
  %v137 = vadd.f32 %v32, %v136
  %v138 = vmul.f32 %v129, 2.0
  %v139 = vsub.f32 %v137, %v138
  %v140 = vmax.f32 %v139, 0.0
  %v141 = vlaneseq
  %v142 = vshrl.u32 %v141, 7
  %v143 = vlaneseq
  %v144 = vand.u32 %v143, 127
  %v145 = vld [vmem:[%s1] sm:$0xff]
  %v146 = vld [vmem:[%s2] sm:$0x1]
  %s147 = sld [smem:[#allocation3 + %s23]]
  %v148 = vstv %s23
  %vm149 = vcmp.ne.s32.totalorder %v142, %v148
  %v150 = vstv %s147
  %vm151 = vcmp.eq.s32.totalorder %v145, %v150
  %vm152 = vmand %vm149, %vm151
  %vm153 = vcmp.ne.s32.totalorder %v144, %v148
  %vm154 = vcmp.ne.s32.totalorder %v146, %v150
  %vm155 = vmand %vm153, %vm154
  %v156 = vsel %vm152, 1, 0
  %v157 = vcvt.s32.f32 %v156
  %vm158 = vcmask 7168
  %v159 = vsel %vm158, %v157, 0.0
  %v160 = vrot.slane %v159, 4
  %v161 = vadd.f32 %v159, %v160
  %v162 = vrot.slane %v161, 2
  %v163 = vadd.f32 %v161, %v162
  %v164 = vrot.slane %v163, 1
  %v165 = vadd.f32 %v163, %v164
  %v166 = vsel %vm155, 1, 0
  %v167 = vcvt.s32.f32 %v166
  %vm168 = vcmask 57344
  %v169 = vsel %vm168, %v167, 0.0
  %170 = vadd.xlane.f32.xlu0 %v169
  %v171 = vpop.xlane.xlu0 %170
  %v172 = vmul.f32 %v165, %v171
  %v173 = vadd.f32 %v172, 0.0
  %v174 = vadd.f32 %v140, 0.5
  %v175 = vsel %vm152, %v174, -1e+30
  %v176 = vsel %vm155, %v135, 1e+30
  %178 = vset.pattern.permute.xlu0 0
  %179 = vperm.xlu0 %178, %v175
  %v180 = vpop.permute.xlu0 %179
  %v182 = vperm.slane %v176, 0
  %v183 = vsub.f32 %v180, %v182
  %v184 = vmax.f32 %v183, 0.0
  %vm185 = vcmask 64512
  %v186 = vsel %vm185, %v184, 0.0
  %187 = vadd.xlane.f32.xlu0 %v186
  %v188 = vpop.xlane.xlu0 %187
  %v189 = vrot.slane %v188, 4
  %v190 = vadd.f32 %v188, %v189
  %v191 = vrot.slane %v190, 2
  %v192 = vadd.f32 %v190, %v191
  %v193 = vrot.slane %v192, 1
  %v194 = vadd.f32 %v192, %v193
  %v195 = vadd.f32 %v194, 0.0
  %vm196 = vcmp.gt.f32.partialorder %v184, 1e-16
  %v197 = vsel %vm196, 1, 0
  %v198 = vcvt.s32.f32 %v197
  %v199 = vsel %vm185, %v198, 0.0
  %200 = vadd.xlane.f32.xlu0 %v199
  %v201 = vpop.xlane.xlu0 %200
  %v202 = vrot.slane %v201, 4
  %v203 = vadd.f32 %v201, %v202
  %v204 = vrot.slane %v203, 2
  %v205 = vadd.f32 %v203, %v204
  %v206 = vrot.slane %v205, 1
  %v207 = vadd.f32 %v205, %v206
  %v208 = vadd.f32 %v207, 0.0
  %s209 = sadd.s32 %s23, 1
  %s210 = sld [smem:[#allocation3 + %s209]]
  %v211 = vstv %s209
  %vm212 = vcmp.ne.s32.totalorder %v142, %v211
  %v213 = vstv %s210
  %vm214 = vcmp.eq.s32.totalorder %v145, %v213
  %vm215 = vmand %vm212, %vm214
  %vm216 = vcmp.ne.s32.totalorder %v144, %v211
  %vm217 = vcmp.ne.s32.totalorder %v146, %v213
  %vm218 = vmand %vm216, %vm217
  %v219 = vsel %vm215, 1, 0
  %v220 = vcvt.s32.f32 %v219
  %v221 = vsel %vm158, %v220, 0.0
  %v222 = vrot.slane %v221, 4
  %v223 = vadd.f32 %v221, %v222
  %v224 = vrot.slane %v223, 2
  %v225 = vadd.f32 %v223, %v224
  %v226 = vrot.slane %v225, 1
  %v227 = vadd.f32 %v225, %v226
  %v228 = vsel %vm218, 1, 0
  %v229 = vcvt.s32.f32 %v228
  %v230 = vsel %vm168, %v229, 0.0
  %231 = vadd.xlane.f32.xlu0 %v230
  %v232 = vpop.xlane.xlu0 %231
  %v233 = vmul.f32 %v227, %v232
  %v234 = vadd.f32 %v173, %v233
  %236 = vrot.lane.b32.xlu0 %v174, 127
  %v237 = vpop.permute.xlu0 %236
  %v239 = vsel %vm215, %v237, -1e+30
  %v241 = vrot.slane %v135, 1
  %v243 = vsel %vm218, %v241, 1e+30
  %245 = vset.pattern.permute.xlu0 0
  %246 = vperm.xlu0 %245, %v239
  %v247 = vpop.permute.xlu0 %246
  %v249 = vperm.slane %v243, 0
  %v250 = vsub.f32 %v247, %v249
  %v251 = vmax.f32 %v250, 0.0
  %v252 = vsel %vm185, %v251, 0.0
  %253 = vadd.xlane.f32.xlu0 %v252
  %v254 = vpop.xlane.xlu0 %253
  %v255 = vrot.slane %v254, 4
  %v256 = vadd.f32 %v254, %v255
  %v257 = vrot.slane %v256, 2
  %v258 = vadd.f32 %v256, %v257
  %v259 = vrot.slane %v258, 1
  %v260 = vadd.f32 %v258, %v259
  %v261 = vadd.f32 %v195, %v260
  %vm262 = vcmp.gt.f32.partialorder %v251, 1e-16
  %v263 = vsel %vm262, 1, 0
  %v264 = vcvt.s32.f32 %v263
  %v265 = vsel %vm185, %v264, 0.0
  %266 = vadd.xlane.f32.xlu0 %v265
  %v267 = vpop.xlane.xlu0 %266
  %v268 = vrot.slane %v267, 4
  %v269 = vadd.f32 %v267, %v268
  %v270 = vrot.slane %v269, 2
  %v271 = vadd.f32 %v269, %v270
  %v272 = vrot.slane %v271, 1
  %v273 = vadd.f32 %v271, %v272
  %v274 = vadd.f32 %v208, %v273
  %s275 = sadd.s32 %s23, 2
  %s276 = sld [smem:[#allocation3 + %s275]]
  %v277 = vstv %s275
  %vm278 = vcmp.ne.s32.totalorder %v142, %v277
  %v279 = vstv %s276
  %vm280 = vcmp.eq.s32.totalorder %v145, %v279
  %vm281 = vmand %vm278, %vm280
  %vm282 = vcmp.ne.s32.totalorder %v144, %v277
  %vm283 = vcmp.ne.s32.totalorder %v146, %v279
  %vm284 = vmand %vm282, %vm283
  %v285 = vsel %vm281, 1, 0
  %v286 = vcvt.s32.f32 %v285
  %v287 = vsel %vm158, %v286, 0.0
  %v288 = vrot.slane %v287, 4
  %v289 = vadd.f32 %v287, %v288
  %v290 = vrot.slane %v289, 2
  %v291 = vadd.f32 %v289, %v290
  %v292 = vrot.slane %v291, 1
  %v293 = vadd.f32 %v291, %v292
  %v294 = vsel %vm284, 1, 0
  %v295 = vcvt.s32.f32 %v294
  %v296 = vsel %vm168, %v295, 0.0
  %297 = vadd.xlane.f32.xlu0 %v296
  %v298 = vpop.xlane.xlu0 %297
  %v299 = vmul.f32 %v293, %v298
  %v300 = vadd.f32 %v234, %v299
  %301 = vrot.lane.b32.xlu0 %v174, 126
  %v302 = vpop.permute.xlu0 %301
  %v304 = vsel %vm281, %v302, -1e+30
  %v305 = vrot.slane %v135, 2
  %v307 = vsel %vm284, %v305, 1e+30
  %309 = vset.pattern.permute.xlu0 0
  %310 = vperm.xlu0 %309, %v304
  %v311 = vpop.permute.xlu0 %310
  %v313 = vperm.slane %v307, 0
  %v314 = vsub.f32 %v311, %v313
  %v315 = vmax.f32 %v314, 0.0
  %v316 = vsel %vm185, %v315, 0.0
  %317 = vadd.xlane.f32.xlu0 %v316
  %v318 = vpop.xlane.xlu0 %317
  %v319 = vrot.slane %v318, 4
  %v320 = vadd.f32 %v318, %v319
  %v321 = vrot.slane %v320, 2
  %v322 = vadd.f32 %v320, %v321
  %v323 = vrot.slane %v322, 1
  %v324 = vadd.f32 %v322, %v323
  %v325 = vadd.f32 %v261, %v324
  %vm326 = vcmp.gt.f32.partialorder %v315, 1e-16
  %v327 = vsel %vm326, 1, 0
  %v328 = vcvt.s32.f32 %v327
  %v329 = vsel %vm185, %v328, 0.0
  %330 = vadd.xlane.f32.xlu0 %v329
  %v331 = vpop.xlane.xlu0 %330
  %v332 = vrot.slane %v331, 4
  %v333 = vadd.f32 %v331, %v332
  %v334 = vrot.slane %v333, 2
  %v335 = vadd.f32 %v333, %v334
  %v336 = vrot.slane %v335, 1
  %v337 = vadd.f32 %v335, %v336
  %v338 = vadd.f32 %v274, %v337
  %s339 = sadd.s32 %s23, 3
  %s340 = sld [smem:[#allocation3 + %s339]]
  %v341 = vstv %s339
  %vm342 = vcmp.ne.s32.totalorder %v142, %v341
  %v343 = vstv %s340
  %vm344 = vcmp.eq.s32.totalorder %v145, %v343
  %vm345 = vmand %vm342, %vm344
  %vm346 = vcmp.ne.s32.totalorder %v144, %v341
  %vm347 = vcmp.ne.s32.totalorder %v146, %v343
  %vm348 = vmand %vm346, %vm347
  %v349 = vsel %vm345, 1, 0
  %v350 = vcvt.s32.f32 %v349
  %v351 = vsel %vm158, %v350, 0.0
  %v352 = vrot.slane %v351, 4
  %v353 = vadd.f32 %v351, %v352
  %v354 = vrot.slane %v353, 2
  %v355 = vadd.f32 %v353, %v354
  %v356 = vrot.slane %v355, 1
  %v357 = vadd.f32 %v355, %v356
  %v358 = vsel %vm348, 1, 0
  %v359 = vcvt.s32.f32 %v358
  %v360 = vsel %vm168, %v359, 0.0
  %361 = vadd.xlane.f32.xlu0 %v360
  %v362 = vpop.xlane.xlu0 %361
  %v363 = vmul.f32 %v357, %v362
  %v364 = vadd.f32 %v300, %v363
  %365 = vrot.lane.b32.xlu0 %v174, 125
  %v366 = vpop.permute.xlu0 %365
  %v368 = vsel %vm345, %v366, -1e+30
  %v369 = vrot.slane %v135, 3
  %v371 = vsel %vm348, %v369, 1e+30
  %373 = vset.pattern.permute.xlu0 0
  %374 = vperm.xlu0 %373, %v368
  %v375 = vpop.permute.xlu0 %374
  %v377 = vperm.slane %v371, 0
  %v378 = vsub.f32 %v375, %v377
  %v379 = vmax.f32 %v378, 0.0
  %v380 = vsel %vm185, %v379, 0.0
  %381 = vadd.xlane.f32.xlu0 %v380
  %v382 = vpop.xlane.xlu0 %381
  %v383 = vrot.slane %v382, 4
  %v384 = vadd.f32 %v382, %v383
  %v385 = vrot.slane %v384, 2
  %v386 = vadd.f32 %v384, %v385
  %v387 = vrot.slane %v386, 1
  %v388 = vadd.f32 %v386, %v387
  %v389 = vadd.f32 %v325, %v388
  %vm390 = vcmp.gt.f32.partialorder %v379, 1e-16
  %v391 = vsel %vm390, 1, 0
  %v392 = vcvt.s32.f32 %v391
  %v393 = vsel %vm185, %v392, 0.0
  %394 = vadd.xlane.f32.xlu0 %v393
  %v395 = vpop.xlane.xlu0 %394
  %v396 = vrot.slane %v395, 4
  %v397 = vadd.f32 %v395, %v396
  %v398 = vrot.slane %v397, 2
  %v399 = vadd.f32 %v397, %v398
  %v400 = vrot.slane %v399, 1
  %v401 = vadd.f32 %v399, %v400
  %v402 = vadd.f32 %v338, %v401
  %s403 = sadd.s32 %s23, 4
  %s404 = sld [smem:[#allocation3 + %s403]]
  %v405 = vstv %s403
  %vm406 = vcmp.ne.s32.totalorder %v142, %v405
  %v407 = vstv %s404
  %vm408 = vcmp.eq.s32.totalorder %v145, %v407
  %vm409 = vmand %vm406, %vm408
  %vm410 = vcmp.ne.s32.totalorder %v144, %v405
  %vm411 = vcmp.ne.s32.totalorder %v146, %v407
  %vm412 = vmand %vm410, %vm411
  %v413 = vsel %vm409, 1, 0
  %v414 = vcvt.s32.f32 %v413
  %v415 = vsel %vm158, %v414, 0.0
  %v416 = vrot.slane %v415, 4
  %v417 = vadd.f32 %v415, %v416
  %v418 = vrot.slane %v417, 2
  %v419 = vadd.f32 %v417, %v418
  %v420 = vrot.slane %v419, 1
  %v421 = vadd.f32 %v419, %v420
  %v422 = vsel %vm412, 1, 0
  %v423 = vcvt.s32.f32 %v422
  %v424 = vsel %vm168, %v423, 0.0
  %425 = vadd.xlane.f32.xlu0 %v424
  %v426 = vpop.xlane.xlu0 %425
  %v427 = vmul.f32 %v421, %v426
  %v428 = vadd.f32 %v364, %v427
  %429 = vrot.lane.b32.xlu0 %v174, 124
  %v430 = vpop.permute.xlu0 %429
  %v432 = vsel %vm409, %v430, -1e+30
  %v433 = vrot.slane %v135, 4
  %v435 = vsel %vm412, %v433, 1e+30
  %437 = vset.pattern.permute.xlu0 0
  %438 = vperm.xlu0 %437, %v432
  %v439 = vpop.permute.xlu0 %438
  %v441 = vperm.slane %v435, 0
  %v442 = vsub.f32 %v439, %v441
  %v443 = vmax.f32 %v442, 0.0
  %v444 = vsel %vm185, %v443, 0.0
  %445 = vadd.xlane.f32.xlu0 %v444
  %v446 = vpop.xlane.xlu0 %445
  %v447 = vrot.slane %v446, 4
  %v448 = vadd.f32 %v446, %v447
  %v449 = vrot.slane %v448, 2
  %v450 = vadd.f32 %v448, %v449
  %v451 = vrot.slane %v450, 1
  %v452 = vadd.f32 %v450, %v451
  %v453 = vadd.f32 %v389, %v452
  %vm454 = vcmp.gt.f32.partialorder %v443, 1e-16
  %v455 = vsel %vm454, 1, 0
  %v456 = vcvt.s32.f32 %v455
  %v457 = vsel %vm185, %v456, 0.0
  %458 = vadd.xlane.f32.xlu0 %v457
  %v459 = vpop.xlane.xlu0 %458
  %v460 = vrot.slane %v459, 4
  %v461 = vadd.f32 %v459, %v460
  %v462 = vrot.slane %v461, 2
  %v463 = vadd.f32 %v461, %v462
  %v464 = vrot.slane %v463, 1
  %v465 = vadd.f32 %v463, %v464
  %v466 = vadd.f32 %v402, %v465
  %s467 = sadd.s32 %s23, 5
  %s468 = sld [smem:[#allocation3 + %s467]]
  %v469 = vstv %s467
  %vm470 = vcmp.ne.s32.totalorder %v142, %v469
  %v471 = vstv %s468
  %vm472 = vcmp.eq.s32.totalorder %v145, %v471
  %vm473 = vmand %vm470, %vm472
  %vm474 = vcmp.ne.s32.totalorder %v144, %v469
  %vm475 = vcmp.ne.s32.totalorder %v146, %v471
  %vm476 = vmand %vm474, %vm475
  %v477 = vsel %vm473, 1, 0
  %v478 = vcvt.s32.f32 %v477
  %v479 = vsel %vm158, %v478, 0.0
  %v480 = vrot.slane %v479, 4
  %v481 = vadd.f32 %v479, %v480
  %v482 = vrot.slane %v481, 2
  %v483 = vadd.f32 %v481, %v482
  %v484 = vrot.slane %v483, 1
  %v485 = vadd.f32 %v483, %v484
  %v486 = vsel %vm476, 1, 0
  %v487 = vcvt.s32.f32 %v486
  %v488 = vsel %vm168, %v487, 0.0
  %489 = vadd.xlane.f32.xlu0 %v488
  %v490 = vpop.xlane.xlu0 %489
  %v491 = vmul.f32 %v485, %v490
  %v492 = vadd.f32 %v428, %v491
  %493 = vrot.lane.b32.xlu0 %v174, 123
  %v494 = vpop.permute.xlu0 %493
  %v496 = vsel %vm473, %v494, -1e+30
  %v497 = vrot.slane %v135, 5
  %v499 = vsel %vm476, %v497, 1e+30
  %501 = vset.pattern.permute.xlu0 0
  %502 = vperm.xlu0 %501, %v496
  %v503 = vpop.permute.xlu0 %502
  %v505 = vperm.slane %v499, 0
  %v506 = vsub.f32 %v503, %v505
  %v507 = vmax.f32 %v506, 0.0
  %v508 = vsel %vm185, %v507, 0.0
  %509 = vadd.xlane.f32.xlu0 %v508
  %v510 = vpop.xlane.xlu0 %509
  %v511 = vrot.slane %v510, 4
  %v512 = vadd.f32 %v510, %v511
  %v513 = vrot.slane %v512, 2
  %v514 = vadd.f32 %v512, %v513
  %v515 = vrot.slane %v514, 1
  %v516 = vadd.f32 %v514, %v515
  %v517 = vadd.f32 %v453, %v516
  %vm518 = vcmp.gt.f32.partialorder %v507, 1e-16
  %v519 = vsel %vm518, 1, 0
  %v520 = vcvt.s32.f32 %v519
  %v521 = vsel %vm185, %v520, 0.0
  %522 = vadd.xlane.f32.xlu0 %v521
  %v523 = vpop.xlane.xlu0 %522
  %v524 = vrot.slane %v523, 4
  %v525 = vadd.f32 %v523, %v524
  %v526 = vrot.slane %v525, 2
  %v527 = vadd.f32 %v525, %v526
  %v528 = vrot.slane %v527, 1
  %v529 = vadd.f32 %v527, %v528
  %v530 = vadd.f32 %v466, %v529
  %s531 = sadd.s32 %s23, 6
  %s532 = sld [smem:[#allocation3 + %s531]]
  %v533 = vstv %s531
  %vm534 = vcmp.ne.s32.totalorder %v142, %v533
  %v535 = vstv %s532
  %vm536 = vcmp.eq.s32.totalorder %v145, %v535
  %vm537 = vmand %vm534, %vm536
  %vm538 = vcmp.ne.s32.totalorder %v144, %v533
  %vm539 = vcmp.ne.s32.totalorder %v146, %v535
  %vm540 = vmand %vm538, %vm539
  %v541 = vsel %vm537, 1, 0
  %v542 = vcvt.s32.f32 %v541
  %v543 = vsel %vm158, %v542, 0.0
  %v544 = vrot.slane %v543, 4
  %v545 = vadd.f32 %v543, %v544
  %v546 = vrot.slane %v545, 2
  %v547 = vadd.f32 %v545, %v546
  %v548 = vrot.slane %v547, 1
  %v549 = vadd.f32 %v547, %v548
  %v550 = vsel %vm540, 1, 0
  %v551 = vcvt.s32.f32 %v550
  %v552 = vsel %vm168, %v551, 0.0
  %553 = vadd.xlane.f32.xlu0 %v552
  %v554 = vpop.xlane.xlu0 %553
  %v555 = vmul.f32 %v549, %v554
  %v556 = vadd.f32 %v492, %v555
  %557 = vrot.lane.b32.xlu0 %v174, 122
  %v558 = vpop.permute.xlu0 %557
  %v560 = vsel %vm537, %v558, -1e+30
  %v561 = vrot.slane %v135, 6
  %v563 = vsel %vm540, %v561, 1e+30
  %565 = vset.pattern.permute.xlu0 0
  %566 = vperm.xlu0 %565, %v560
  %v567 = vpop.permute.xlu0 %566
  %v569 = vperm.slane %v563, 0
  %v570 = vsub.f32 %v567, %v569
  %v571 = vmax.f32 %v570, 0.0
  %v572 = vsel %vm185, %v571, 0.0
  %573 = vadd.xlane.f32.xlu0 %v572
  %v574 = vpop.xlane.xlu0 %573
  %v575 = vrot.slane %v574, 4
  %v576 = vadd.f32 %v574, %v575
  %v577 = vrot.slane %v576, 2
  %v578 = vadd.f32 %v576, %v577
  %v579 = vrot.slane %v578, 1
  %v580 = vadd.f32 %v578, %v579
  %v581 = vadd.f32 %v517, %v580
  %vm582 = vcmp.gt.f32.partialorder %v571, 1e-16
  %v583 = vsel %vm582, 1, 0
  %v584 = vcvt.s32.f32 %v583
  %v585 = vsel %vm185, %v584, 0.0
  %586 = vadd.xlane.f32.xlu0 %v585
  %v587 = vpop.xlane.xlu0 %586
  %v588 = vrot.slane %v587, 4
  %v589 = vadd.f32 %v587, %v588
  %v590 = vrot.slane %v589, 2
  %v591 = vadd.f32 %v589, %v590
  %v592 = vrot.slane %v591, 1
  %v593 = vadd.f32 %v591, %v592
  %v594 = vadd.f32 %v530, %v593
  %s595 = sadd.s32 %s23, 7
  %s596 = sld [smem:[#allocation3 + %s595]]
  %v597 = vstv %s595
  %vm598 = vcmp.ne.s32.totalorder %v142, %v597
  %v599 = vstv %s596
  %vm600 = vcmp.eq.s32.totalorder %v145, %v599
  %vm601 = vmand %vm598, %vm600
  %vm602 = vcmp.ne.s32.totalorder %v144, %v597
  %vm603 = vcmp.ne.s32.totalorder %v146, %v599
  %vm604 = vmand %vm602, %vm603
  %v605 = vsel %vm601, 1, 0
  %v606 = vcvt.s32.f32 %v605
  %v607 = vsel %vm158, %v606, 0.0
  %v608 = vrot.slane %v607, 4
  %v609 = vadd.f32 %v607, %v608
  %v610 = vrot.slane %v609, 2
  %v611 = vadd.f32 %v609, %v610
  %v612 = vrot.slane %v611, 1
  %v613 = vadd.f32 %v611, %v612
  %v614 = vsel %vm604, 1, 0
  %v615 = vcvt.s32.f32 %v614
  %v616 = vsel %vm168, %v615, 0.0
  %617 = vadd.xlane.f32.xlu0 %v616
  %v618 = vpop.xlane.xlu0 %617
  %v619 = vmul.f32 %v613, %v618
  %v620 = vadd.f32 %v556, %v619
  %621 = vrot.lane.b32.xlu0 %v174, 121
  %v622 = vpop.permute.xlu0 %621
  %v624 = vsel %vm601, %v622, -1e+30
  %v625 = vrot.slane %v135, 7
  %v627 = vsel %vm604, %v625, 1e+30
  %629 = vset.pattern.permute.xlu0 0
  %630 = vperm.xlu0 %629, %v624
  %v631 = vpop.permute.xlu0 %630
  %v633 = vperm.slane %v627, 0
  %v634 = vsub.f32 %v631, %v633
  %v635 = vmax.f32 %v634, 0.0
  %v636 = vsel %vm185, %v635, 0.0
  %637 = vadd.xlane.f32.xlu0 %v636
  %v638 = vpop.xlane.xlu0 %637
  %v639 = vrot.slane %v638, 4
  %v640 = vadd.f32 %v638, %v639
  %v641 = vrot.slane %v640, 2
  %v642 = vadd.f32 %v640, %v641
  %v643 = vrot.slane %v642, 1
  %v644 = vadd.f32 %v642, %v643
  %v645 = vadd.f32 %v581, %v644
  %vm646 = vcmp.gt.f32.partialorder %v635, 1e-16
  %v647 = vsel %vm646, 1, 0
  %v648 = vcvt.s32.f32 %v647
  %v649 = vsel %vm185, %v648, 0.0
  %650 = vadd.xlane.f32.xlu0 %v649
  %v651 = vpop.xlane.xlu0 %650
  %v652 = vrot.slane %v651, 4
  %v653 = vadd.f32 %v651, %v652
  %v654 = vrot.slane %v653, 2
  %v655 = vadd.f32 %v653, %v654
  %v656 = vrot.slane %v655, 1
  %v657 = vadd.f32 %v655, %v656
  %v658 = vadd.f32 %v594, %v657
  %vm659 = vcmp.eq.s32.totalorder %v142, 0
  %vm660 = vcmp.eq.s32.totalorder %v144, 0
  %vm661 = vmand %vm659, %vm660
  %v662 = vsel %vm661, %v645, 0.0
  %vm663 = vcmp.eq.s32.totalorder %v144, 1
  %vm664 = vmand %vm659, %vm663
  %v665 = vsel %vm664, %v658, 0.0
  %v666 = vadd.f32 %v662, %v665
  %vm667 = vcmp.eq.s32.totalorder %v144, 2
  %vm668 = vmand %vm659, %vm667
  %s670 = vtos %v620
  %v671 = vstv %s670
  %v673 = vsel %vm668, %v671, 0.0
  %v674 = vadd.f32 %v666, %v673
  %675 = vst [vmem:[%s4] sm:$0xff] %v674
  // Predicated region
  $region14: #{all_triplet_miner.1} parent=0 // pred_check
    _
  $region15: #{all_triplet_miner.1} parent=0 // pred_check_branch
    %677 = sbr.rel (0) target = $region17
  $region16: #{all_triplet_miner.1} parent=0 // pred_region
    _
  $region17: #{all_triplet_miner.1} parent=0 // pred_fallthru
    _
  // Predicated region
  $region18: #{all_triplet_miner.1} parent=0 // pred_check
    _
  $region19: #{all_triplet_miner.1} parent=0 // pred_check_branch
    %679 = sbr.rel (0) target = $region21
  $region20: #{all_triplet_miner.1} parent=0 // pred_region
    _
  $region21: #{all_triplet_miner.1} parent=0 // pred_fallthru
    _

</llo_original>
